<compile_context>
chip_gen: v6e
topology: v6e:2x2x1
jax: 0.10.0
libtpu: 0.0.40
codegen_flags: <defaults>
</compile_context>

<pallas_src>
from functools import partial

import jax
import jax.numpy as jnp
import numpy as np
from jax.experimental import pallas as pl
from jax.experimental.pallas import tpu as pltpu

BINS = 100
FEAT = BINS * 6          # 600, hardcoded in the module


def _vmem_capacity_bytes():
    """Trace-time VMEM capacity query; conservative (v7x) fallback."""
    try:
        info = pltpu.get_tpu_info()
        cap = getattr(info, "vmem_capacity_bytes", None)
        if cap:
            return int(cap)
    except Exception:
        pass
    return 64 << 20  # v7x per-TensorCore VMEM (smallest of the targets)


# ---------------------------------------------------------------------------
# Fused kernel: hist MLP -> per-set max/min pooling -> combined MLP -> tanh*m
# ---------------------------------------------------------------------------
def _fused_kernel(n_hist, n_comb, hist_douts, comb_douts, margin, tb, n_rows,
                  dot_dtype, x_ref, *refs):
    """One grid step = TB sets.

    x_ref   : (TB, N, FEAT) block (f32 or bf16 in HBM)
    refs    : hist weights..., combined weights..., bias matrix, out_ref
    out_ref : (TB, 2) block
    """
    out_ref = refs[-1]
    bias_ref = refs[-2]
    w_refs = refs[:-2]

    def dense(v, layer, dout):
        # MXU operands in dot_dtype (bf16 fast path); accumulation, bias add
        # and all elementwise work stay f32.
        w = w_refs[layer][...]
        b = bias_ref[layer:layer + 1, :dout]
        return jnp.dot(v.astype(dot_dtype), w.astype(dot_dtype),
                       preferred_element_type=jnp.float32) + b

    f = x_ref.shape[-1]
    # Batch TB sets into one (TB*N, F) activation so the MXU M dim is filled.
    # This reshape is a free view only when N is sublane aligned (N % 8 == 0
    # for an f32 input, % 16 for bf16); otherwise it costs a per-step VMEM
    # relayout.
    # TODO(synk): for unaligned N, pad N once upstream or contract the 3-D
    # block directly instead of reshaping.
    h = x_ref[...].reshape(tb * n_rows, f)

    # encoder_hist: Linear (+ ReLU on all but the last layer), row-wise.
    for l in range(n_hist):
        h = dense(h, l, hist_douts[l])
        if l < n_hist - 1:
            h = jnp.maximum(h, 0.0)

    nh = hist_douts[-1]
    h = h.reshape(tb, n_rows, nh)
    pooled = jnp.concatenate(
        [jnp.max(h, axis=1), jnp.min(h, axis=1)], axis=1)      # (TB, 2*nh) f32

    # encoder_combined fused epilogue (row-wise -> per-block is exact).
    g = pooled
    for l in range(n_comb):
        g = dense(g, n_hist + l, comb_douts[l])
        if l < n_comb - 1:
            g = jnp.maximum(g, 0.0)

    out_ref[...] = jnp.tanh(g) * margin


# ---------------------------------------------------------------------------
# Wrapper
# ---------------------------------------------------------------------------
def _choose_tb(batch, n_rows, itemsize, max_sets_per_step=None):
    """Sets per grid step.

    Targets an input block of ~8 MiB on v7x (64 MiB VMEM/TC) and ~16 MiB on
    v5e/v6e (128 MiB VMEM) so per-step overhead is amortized and the DMA
    pipeline stays full, while the double-buffered block + params +
    activations stay within budget on every generation.
    """
    vmem_cap = _vmem_capacity_bytes()
    block_cap = (16 << 20) if vmem_cap >= (100 << 20) else (8 << 20)
    row_bytes = max(1, n_rows * FEAT * itemsize)
    tb = max(8, (block_cap // row_bytes) // 8 * 8)
    if max_sets_per_step is not None:
        tb = min(tb, max(8, (max_sets_per_step // 8) * 8))
    if tb >= batch:
        return batch          # single full-extent block (always legal)
    return tb                 # multiple of 8 -> sublane-aligned output block


def new_forward(fvs_eig, hist_weights, comb_weights, margin,
                dot_dtype=jnp.float32, max_sets_per_step=None):
    """fvs_eig: (B, N, 600) f32 or bf16  ->  (B, 2) f32."""
    B, N, F = fvs_eig.shape
    assert F == FEAT, f"expected feature dim {FEAT}, got {F}"

    itemsize = fvs_eig.dtype.itemsize
    tb = _choose_tb(B, N, itemsize, max_sets_per_step)
    grid = pl.cdiv(B, tb)

    w_list, hist_douts, comb_douts = [], [], []
    for (w, _) in hist_weights:
        w_list.append(w)
        hist_douts.append(w.shape[1])
    for (w, _) in comb_weights:
        w_list.append(w)
        comb_douts.append(w.shape[1])

    # Consolidate all biases into one (n_layers_total, max_dout) f32 array.
    all_biases = [b for _, b in hist_weights] + [b for _, b in comb_weights]
    max_dout = max(b.shape[0] for b in all_biases)
    bias_all = jnp.stack(
        [jnp.pad(b, (0, max_dout - b.shape[0])) for b in all_biases], axis=0)

    n_hist, n_comb = len(hist_weights), len(comb_weights)
    nout = comb_douts[-1]

    in_specs = [pl.BlockSpec((tb, N, F), lambda i: (i, 0, 0))]
    # NOTE: if profiling shows exposed DMA at large tb, add
    # pipeline_mode=pl.Buffered(3) on the x BlockSpec only (weights/bias keep
    # their constant-index single-fetch behavior).
    for w in w_list:
        in_specs.append(pl.BlockSpec(w.shape, lambda i: (0, 0)))
    in_specs.append(pl.BlockSpec(bias_all.shape, lambda i: (0, 0)))

    # Generation-aware VMEM budget: double-buffered x block + resident params
    # + live f32 activations, capped below physical VMEM (v7x = 64 MiB/TC).
    vmem_cap = _vmem_capacity_bytes()
    x_block_bytes = tb * N * F * itemsize
    max_hidden = max(hist_douts + comb_douts)
    act_bytes = 4 * tb * N * max_hidden
    param_bytes = 4 * (sum(int(w.size) for w in w_list) + int(bias_all.size))
    need = 3 * x_block_bytes + 2 * param_bytes + 4 * act_bytes + (4 << 20)
    vmem_limit = int(min(max(need, 32 << 20), vmem_cap - (8 << 20)))

    out = pl.pallas_call(
        partial(_fused_kernel, n_hist, n_comb, tuple(hist_douts),
                tuple(comb_douts), float(margin), tb, N, dot_dtype),
        out_shape=jax.ShapeDtypeStruct((B, nout), jnp.float32),
        grid=(grid,),
        in_specs=in_specs,
        out_specs=pl.BlockSpec((tb, nout), lambda i: (i, 0)),
        compiler_params=pltpu.CompilerParams(
            dimension_semantics=("parallel",),
            vmem_limit_bytes=vmem_limit),
    )(fvs_eig, *w_list, bias_all)
    return out


# ---------------------------------------------------------------------------
# Deterministic parameter init (mirrors nn.Linear shapes, stored as (in, out))
# ---------------------------------------------------------------------------
def make_mlp_params(key, ninput, nh, noutput, nlayers):
    dims = ([(ninput, noutput)] if nlayers == 1 else
            [(ninput, nh)] + [(nh, nh)] * (nlayers - 2) + [(nh, noutput)])
    weights = []
    for (din, dout) in dims:
        key, kw, kb = jax.random.split(key, 3)
        bound = 1.0 / np.sqrt(din)
        w = jax.random.uniform(kw, (din, dout), jnp.float32, -bound, bound)
        b = jax.random.uniform(kb, (dout,), jnp.float32, -bound, bound)
        weights.append((w, b))
    return weights


def reference_forward(x, hist_weights, comb_weights, margin):
    """Plain-JAX reference mirroring the PyTorch forward."""
    pooled = []
    for i in range(x.shape[0]):
        h = x[i]
        for l, (w, b) in enumerate(hist_weights):
            h = h @ w + b
            if l < len(hist_weights) - 1:
                h = jnp.maximum(h, 0.0)
        pooled.append(jnp.concatenate([h.max(axis=0), h.min(axis=0)], axis=0))
    h = jnp.stack(pooled, axis=0)
    for l, (w, b) in enumerate(comb_weights):
        h = h @ w + b
        if l < len(comb_weights) - 1:
            h = jnp.maximum(h, 0.0)
    return jnp.tanh(h) * margin


# ---------------------------------------------------------------------------
if __name__ == "__main__":
    nh, nh2 = 32, 32
    nlayers, nlayers2 = 2, 2
    margin = 8.0

    key = jax.random.PRNGKey(0)
    kh, kc, kx1, kx2 = jax.random.split(key, 4)

    hist_weights = make_mlp_params(kh, FEAT, nh, nh, nlayers)     # encoder_hist
    comb_weights = make_mlp_params(kc, 2 * nh, nh2, 2, nlayers2)  # encoder_combined

    # Case 1: small batch -> single full-extent block (B=6 < TB), f32 path.
    fvs1 = jax.random.normal(kx1, (6, 8, FEAT), jnp.float32)
    out1 = jax.block_until_ready(
        new_forward(fvs1, hist_weights, comb_weights, margin))
    ref1 = reference_forward(fvs1, hist_weights, comb_weights, margin)
    np.testing.assert_allclose(np.asarray(out1), np.asarray(ref1),
                               rtol=1e-4, atol=1e-4)
    assert out1.shape == (6, 2)

    # Case 2: multi-step grid with a partial (masked) last block:
    # B=40, TB forced to 16 -> grid=3, last block has 8 valid sets of 16.
    fvs2 = jax.random.normal(kx2, (40, 8, FEAT), jnp.float32)
    out2 = jax.block_until_ready(
        new_forward(fvs2, hist_weights, comb_weights, margin,
                    max_sets_per_step=16))
    ref2 = reference_forward(fvs2, hist_weights, comb_weights, margin)
    np.testing.assert_allclose(np.asarray(out2), np.asarray(ref2),
                               rtol=1e-4, atol=1e-4)
    assert out2.shape == (40, 2)

    # Case 3: bf16 input in HBM + bf16 MXU operands (f32 accumulation) — the
    # mem-bound fast path; compared to the f32 reference at loose tolerance.
    out3 = jax.block_until_ready(
        new_forward(fvs2.astype(jnp.bfloat16), hist_weights, comb_weights,
                    margin, dot_dtype=jnp.bfloat16))
    np.testing.assert_allclose(np.asarray(out3), np.asarray(ref2),
                               rtol=5e-2, atol=2.5e-1)

    print("KERNEL_OK")
</pallas_src>

<mosaic_0001>
module attributes {stable_mosaic.version = 11 : i64} {
  func.func @_fused_kernel(%arg0: i32, %arg1: memref<6x8x600xf32, #tpu.memory_space<vmem>>, %arg2: memref<600x32xf32, #tpu.memory_space<vmem>>, %arg3: memref<32x32xf32, #tpu.memory_space<vmem>>, %arg4: memref<64x32xf32, #tpu.memory_space<vmem>>, %arg5: memref<32x2xf32, #tpu.memory_space<vmem>>, %arg6: memref<4x32xf32, #tpu.memory_space<vmem>>, %arg7: memref<6x2xf32, #tpu.memory_space<vmem>>) attributes {dimension_semantics = [#tpu.dimension_semantics<parallel>], iteration_bounds = array<i64: 1>, scalar_prefetch = 0 : i64, scratch_operands = 0 : i64, tpu.core_type = #tpu.core_type<tc>, window_params = [{transform_indices = @transform_0, window_bounds = array<i64: 6, 8, 600>}, {pipeline_mode = #tpu.pipeline_mode<synchronous>, transform_indices = @transform_1, window_bounds = array<i64: 600, 32>}, {pipeline_mode = #tpu.pipeline_mode<synchronous>, transform_indices = @transform_2, window_bounds = array<i64: 32, 32>}, {pipeline_mode = #tpu.pipeline_mode<synchronous>, transform_indices = @transform_3, window_bounds = array<i64: 64, 32>}, {pipeline_mode = #tpu.pipeline_mode<synchronous>, transform_indices = @transform_4, window_bounds = array<i64: 32, 2>}, {pipeline_mode = #tpu.pipeline_mode<synchronous>, transform_indices = @transform_5, window_bounds = array<i64: 4, 32>}, {transform_indices = @transform_6, window_bounds = array<i64: 6, 2>}]} {
    %c0 = arith.constant 0 : index
    %c0_0 = arith.constant 0 : index
    %c0_1 = arith.constant 0 : index
    %0 = vector.load %arg1[%c0, %c0_0, %c0_1] : memref<6x8x600xf32, #tpu.memory_space<vmem>>, vector<6x8x600xf32>
    %1 = vector.shape_cast %0 : vector<6x8x600xf32> to vector<48x600xf32>
    %c0_2 = arith.constant 0 : index
    %c0_3 = arith.constant 0 : index
    %2 = vector.load %arg2[%c0_2, %c0_3] : memref<600x32xf32, #tpu.memory_space<vmem>>, vector<600x32xf32>
    %c0_4 = arith.constant 0 : index
    %c0_5 = arith.constant 0 : index
    %3 = vector.load %arg6[%c0_4, %c0_5] : memref<4x32xf32, #tpu.memory_space<vmem>>, vector<1x32xf32>
    %cst = arith.constant dense<0.000000e+00> : vector<48x32xf32>
    %4 = tpu.matmul %1, %2, %cst {dimension_numbers = #tpu.dot_dimension_numbers<[1], [0], [0], [1], [0, 0, 1, 1], [], []>} : vector<48x600xf32>, vector<600x32xf32>, vector<48x32xf32> -> vector<48x32xf32>
    %5 = vector.broadcast %3 : vector<1x32xf32> to vector<48x32xf32>
    %6 = arith.addf %4, %5 : vector<48x32xf32>
    %cst_6 = arith.constant 0.000000e+00 : f32
    %7 = vector.broadcast %cst_6 : f32 to vector<48x32xf32>
    %8 = arith.maximumf %6, %7 : vector<48x32xf32>
    %c0_7 = arith.constant 0 : index
    %c0_8 = arith.constant 0 : index
    %9 = vector.load %arg3[%c0_7, %c0_8] : memref<32x32xf32, #tpu.memory_space<vmem>>, vector<32x32xf32>
    %c1 = arith.constant 1 : index
    %c0_9 = arith.constant 0 : index
    %10 = vector.load %arg6[%c1, %c0_9] : memref<4x32xf32, #tpu.memory_space<vmem>>, vector<1x32xf32>
    %cst_10 = arith.constant dense<0.000000e+00> : vector<48x32xf32>
    %11 = tpu.matmul %8, %9, %cst_10 {dimension_numbers = #tpu.dot_dimension_numbers<[1], [0], [0], [1], [0, 0, 1, 1], [], []>} : vector<48x32xf32>, vector<32x32xf32>, vector<48x32xf32> -> vector<48x32xf32>
    %12 = vector.broadcast %10 : vector<1x32xf32> to vector<48x32xf32>
    %13 = arith.addf %11, %12 : vector<48x32xf32>
    %14 = vector.shape_cast %13 : vector<48x32xf32> to vector<6x8x32xf32>
    %cst_11 = arith.constant dense<0xFF800000> : vector<6x32xf32>
    %15 = vector.multi_reduction <maximumf>, %14, %cst_11 [1] : vector<6x8x32xf32> to vector<6x32xf32>
    %cst_12 = arith.constant dense<0x7F800000> : vector<6x32xf32>
    %16 = vector.multi_reduction <minimumf>, %14, %cst_12 [1] : vector<6x8x32xf32> to vector<6x32xf32>
    %17 = tpu.concatenate %15, %16 in 1 : vector<6x32xf32>, vector<6x32xf32> -> vector<6x64xf32>
    %c0_13 = arith.constant 0 : index
    %c0_14 = arith.constant 0 : index
    %18 = vector.load %arg4[%c0_13, %c0_14] : memref<64x32xf32, #tpu.memory_space<vmem>>, vector<64x32xf32>
    %c2 = arith.constant 2 : index
    %c0_15 = arith.constant 0 : index
    %19 = vector.load %arg6[%c2, %c0_15] : memref<4x32xf32, #tpu.memory_space<vmem>>, vector<1x32xf32>
    %cst_16 = arith.constant dense<0.000000e+00> : vector<6x32xf32>
    %20 = tpu.matmul %17, %18, %cst_16 {dimension_numbers = #tpu.dot_dimension_numbers<[1], [0], [0], [1], [0, 0, 1, 1], [], []>} : vector<6x64xf32>, vector<64x32xf32>, vector<6x32xf32> -> vector<6x32xf32>
    %21 = vector.broadcast %19 : vector<1x32xf32> to vector<6x32xf32>
    %22 = arith.addf %20, %21 : vector<6x32xf32>
    %cst_17 = arith.constant 0.000000e+00 : f32
    %23 = vector.broadcast %cst_17 : f32 to vector<6x32xf32>
    %24 = arith.maximumf %22, %23 : vector<6x32xf32>
    %c0_18 = arith.constant 0 : index
    %c0_19 = arith.constant 0 : index
    %25 = vector.load %arg5[%c0_18, %c0_19] : memref<32x2xf32, #tpu.memory_space<vmem>>, vector<32x2xf32>
    %c3 = arith.constant 3 : index
    %c0_20 = arith.constant 0 : index
    %26 = vector.load %arg6[%c3, %c0_20] : memref<4x32xf32, #tpu.memory_space<vmem>>, vector<1x2xf32>
    %cst_21 = arith.constant dense<0.000000e+00> : vector<6x2xf32>
    %27 = tpu.matmul %24, %25, %cst_21 {dimension_numbers = #tpu.dot_dimension_numbers<[1], [0], [0], [1], [0, 0, 1, 1], [], []>} : vector<6x32xf32>, vector<32x2xf32>, vector<6x2xf32> -> vector<6x2xf32>
    %28 = vector.broadcast %26 : vector<1x2xf32> to vector<6x2xf32>
    %29 = arith.addf %27, %28 : vector<6x2xf32>
    %30 = math.tanh %29 : vector<6x2xf32>
    %cst_22 = arith.constant 8.000000e+00 : f32
    %31 = vector.broadcast %cst_22 : f32 to vector<6x2xf32>
    %32 = arith.mulf %30, %31 : vector<6x2xf32>
    %c0_23 = arith.constant 0 : index
    %c0_24 = arith.constant 0 : index
    %33 = vector.load %arg7[%c0_23, %c0_24] : memref<6x2xf32, #tpu.memory_space<vmem>>, vector<6x2xf32>
    tpu.vector_store %arg7[%c0_23, %c0_24], %32 {strides = array<i32>} : memref<6x2xf32, #tpu.memory_space<vmem>>, vector<6x2xf32>,
    return
  }
  func.func @transform_0(%arg0: i32) -> (i32, i32, i32) {
    %c0_i32 = arith.constant 0 : i32
    %c0_i32_0 = arith.constant 0 : i32
    %c0_i32_1 = arith.constant 0 : i32
    return %arg0, %c0_i32, %c0_i32_0 : i32, i32, i32
  }
  func.func @transform_1(%arg0: i32) -> (i32, i32) {
    %c0_i32 = arith.constant 0 : i32
    %c0_i32_0 = arith.constant 0 : i32
    %c0_i32_1 = arith.constant 0 : i32
    return %c0_i32, %c0_i32_0 : i32, i32
  }
  func.func @transform_2(%arg0: i32) -> (i32, i32) {
    %c0_i32 = arith.constant 0 : i32
    %c0_i32_0 = arith.constant 0 : i32
    %c0_i32_1 = arith.constant 0 : i32
    return %c0_i32, %c0_i32_0 : i32, i32
  }
  func.func @transform_3(%arg0: i32) -> (i32, i32) {
    %c0_i32 = arith.constant 0 : i32
    %c0_i32_0 = arith.constant 0 : i32
    %c0_i32_1 = arith.constant 0 : i32
    return %c0_i32, %c0_i32_0 : i32, i32
  }
  func.func @transform_4(%arg0: i32) -> (i32, i32) {
    %c0_i32 = arith.constant 0 : i32
    %c0_i32_0 = arith.constant 0 : i32
    %c0_i32_1 = arith.constant 0 : i32
    return %c0_i32, %c0_i32_0 : i32, i32
  }
  func.func @transform_5(%arg0: i32) -> (i32, i32) {
    %c0_i32 = arith.constant 0 : i32
    %c0_i32_0 = arith.constant 0 : i32
    %c0_i32_1 = arith.constant 0 : i32
    return %c0_i32, %c0_i32_0 : i32, i32
  }
  func.func @transform_6(%arg0: i32) -> (i32, i32) {
    %c0_i32 = arith.constant 0 : i32
    %c0_i32_0 = arith.constant 0 : i32
    return %arg0, %c0_i32 : i32, i32
  }
}

</mosaic_0001>

<llo_original>
// kernel: tpu_custom_call.1
$region0: #{tpu_custom_call.1}
  #allocation0 [shape = 'u32[]', space=smem, size = 0x4, offset = 0x4, fixed_abs, tag = 'smem constant byte address 0x4 - core index']
  #allocation1 [shape = 'u32[144,128]{1,0:T(1,128)}', space=vmem, size = 0x12000, scoped, tag = 'internal scratch']
  %s0 = inlined_call_operand.vmem [shape: f32[6,8,600], index: 0, kind: input, shape index: {}]
  %s1 = inlined_call_operand.vmem [shape: f32[600,32], index: 1, kind: input, shape index: {}]
  %s2 = inlined_call_operand.vmem [shape: f32[32,32], index: 2, kind: input, shape index: {}]
  %s3 = inlined_call_operand.vmem [shape: f32[64,32], index: 3, kind: input, shape index: {}]
  %s4 = inlined_call_operand.vmem [shape: f32[32,2], index: 4, kind: input, shape index: {}]
  %s5 = inlined_call_operand.vmem [shape: f32[4,32], index: 5, kind: input, shape index: {}]
  %s6 = inlined_call_operand.vmem [shape: f32[6,2], index: 6, kind: output, shape index: {}]
  %s7 = sld [smem:[#allocation0]]
  $region34: #{tpu_custom_call.1} parent=0
    _
  %s9 = ssub.s32 1, %s7
  %s10 = scalar_select 0, %s9, %s7
  // Predicated region
  $region2: #{tpu_custom_call.1} parent=0 // pred_check
    _
  $region3: #{tpu_custom_call.1} parent=0 // pred_check_branch
    %12 = sbr.rel (0) target = $region5
  $region4: #{tpu_custom_call.1} parent=0 // pred_region
    _
  $region5: #{tpu_custom_call.1} parent=0 // pred_fallthru
    _
  // Predicated region
  $region6: #{tpu_custom_call.1} parent=0 // pred_check
    _
  $region7: #{tpu_custom_call.1} parent=0 // pred_check_branch
    %14 = sbr.rel (0) target = $region9
  $region8: #{tpu_custom_call.1} parent=0 // pred_region
    _
  $region9: #{tpu_custom_call.1} parent=0 // pred_fallthru
    _
  // Predicated region
  $region10: #{tpu_custom_call.1} parent=0 // pred_check
    _
  $region11: #{tpu_custom_call.1} parent=0 // pred_check_branch
    %16 = sbr.rel (0) target = $region13
  $region12: #{tpu_custom_call.1} parent=0 // pred_region
    _
  $region13: #{tpu_custom_call.1} parent=0 // pred_fallthru
    _
  // Predicated region
  $region14: #{tpu_custom_call.1} parent=0 // pred_check
    _
  $region15: #{tpu_custom_call.1} parent=0 // pred_check_branch
    %18 = sbr.rel (0) target = $region17
  $region16: #{tpu_custom_call.1} parent=0 // pred_region
    _
  $region17: #{tpu_custom_call.1} parent=0 // pred_fallthru
    _
  // Predicated region
  $region18: #{tpu_custom_call.1} parent=0 // pred_check
    _
  $region19: #{tpu_custom_call.1} parent=0 // pred_check_branch
    %20 = sbr.rel (0) target = $region21
  $region20: #{tpu_custom_call.1} parent=0 // pred_region
    _
  $region21: #{tpu_custom_call.1} parent=0 // pred_fallthru
    _
  // Predicated region
  $region22: #{tpu_custom_call.1} parent=0 // pred_check
    _
  $region23: #{tpu_custom_call.1} parent=0 // pred_check_branch
    %22 = sbr.rel (0) target = $region25
  $region24: #{tpu_custom_call.1} parent=0 // pred_region
    _
  $region25: #{tpu_custom_call.1} parent=0 // pred_fallthru
    _
  %v23 = vld [vmem:[%s0] sm:$0xff]
  %v24 = vld [vmem:[%s0 + $0x8] sm:$0xff]
  %v25 = vld [vmem:[%s0 + $0x10] sm:$0xff]
  %v26 = vld [vmem:[%s0 + $0x18] sm:$0xff]
  %v27 = vld [vmem:[%s0 + $0x20] sm:$0xff]
  %v28 = vld [vmem:[%s0 + $0x28] sm:$0xff]
  %v29 = vld [vmem:[%s0 + $0x30] sm:$0xff]
  %v30 = vld [vmem:[%s0 + $0x38] sm:$0xff]
  %v31 = vld [vmem:[%s0 + $0x40] sm:$0xff]
  %v32 = vld [vmem:[%s0 + $0x48] sm:$0xff]
  %v33 = vld [vmem:[%s0 + $0x50] sm:$0xff]
  %v34 = vld [vmem:[%s0 + $0x58] sm:$0xff]
  %v35 = vld [vmem:[%s0 + $0x60] sm:$0xff]
  %v36 = vld [vmem:[%s0 + $0x68] sm:$0xff]
  %v37 = vld [vmem:[%s0 + $0x70] sm:$0xff]
  %v38 = vld [vmem:[%s0 + $0x78] sm:$0xff]
  %v39 = vld [vmem:[%s0 + $0x80] sm:$0xff]
  %v40 = vld [vmem:[%s0 + $0x88] sm:$0xff]
  %v41 = vld [vmem:[%s0 + $0x90] sm:$0xff]
  %v42 = vld [vmem:[%s0 + $0x98] sm:$0xff]
  %v43 = vld [vmem:[%s0 + $0xa0] sm:$0xff]
  %v44 = vld [vmem:[%s0 + $0xa8] sm:$0xff]
  %v45 = vld [vmem:[%s0 + $0xb0] sm:$0xff]
  %v46 = vld [vmem:[%s0 + $0xb8] sm:$0xff]
  %v47 = vld [vmem:[%s0 + $0xc0] sm:$0xff]
  %v48 = vld [vmem:[%s0 + $0xc8] sm:$0xff]
  %v49 = vld [vmem:[%s0 + $0xd0] sm:$0xff]
  %v50 = vld [vmem:[%s0 + $0xd8] sm:$0xff]
  %v51 = vld [vmem:[%s0 + $0xe0] sm:$0xff]
  %v52 = vld [vmem:[%s0 + $0xe8] sm:$0xff]
  %v53 = vld [vmem:[%s1] sm:$0xff]
  %v54 = vld [vmem:[%s1 + $0x8] sm:$0xff]
  %v55 = vld [vmem:[%s1 + $0x10] sm:$0xff]
  %v56 = vld [vmem:[%s1 + $0x18] sm:$0xff]
  %v57 = vld [vmem:[%s1 + $0x20] sm:$0xff]
  %v58 = vld [vmem:[%s1 + $0x28] sm:$0xff]
  %v59 = vld [vmem:[%s1 + $0x30] sm:$0xff]
  %v60 = vld [vmem:[%s1 + $0x38] sm:$0xff]
  %v61 = vld [vmem:[%s1 + $0x40] sm:$0xff]
  %v62 = vld [vmem:[%s1 + $0x48] sm:$0xff]
  %v63 = vld [vmem:[%s1 + $0x50] sm:$0xff]
  %v64 = vld [vmem:[%s1 + $0x58] sm:$0xff]
  %v65 = vld [vmem:[%s1 + $0x60] sm:$0xff]
  %v66 = vld [vmem:[%s1 + $0x68] sm:$0xff]
  %v67 = vld [vmem:[%s1 + $0x70] sm:$0xff]
  %v68 = vld [vmem:[%s1 + $0x78] sm:$0xff]
  %v69 = vld [vmem:[%s1 + $0x80] sm:$0xff]
  %v70 = vld [vmem:[%s1 + $0x88] sm:$0xff]
  %v71 = vld [vmem:[%s1 + $0x90] sm:$0xff]
  %v72 = vld [vmem:[%s1 + $0x98] sm:$0xff]
  %v73 = vld [vmem:[%s1 + $0xa0] sm:$0xff]
  %v74 = vld [vmem:[%s1 + $0xa8] sm:$0xff]
  %v75 = vld [vmem:[%s1 + $0xb0] sm:$0xff]
  %v76 = vld [vmem:[%s1 + $0xb8] sm:$0xff]
  %v77 = vld [vmem:[%s1 + $0xc0] sm:$0xff]
  %v78 = vld [vmem:[%s1 + $0xc8] sm:$0xff]
  %v79 = vld [vmem:[%s1 + $0xd0] sm:$0xff]
  %v80 = vld [vmem:[%s1 + $0xd8] sm:$0xff]
  %v81 = vld [vmem:[%s1 + $0xe0] sm:$0xff]
  %v82 = vld [vmem:[%s1 + $0xe8] sm:$0xff]
  %v83 = vld [vmem:[%s1 + $0xf0] sm:$0xff]
  %v84 = vld [vmem:[%s1 + $0xf8] sm:$0xff]
  %v85 = vld [vmem:[%s1 + $0x100] sm:$0xff]
  %v86 = vld [vmem:[%s1 + $0x108] sm:$0xff]
  %v87 = vld [vmem:[%s1 + $0x110] sm:$0xff]
  %v88 = vld [vmem:[%s1 + $0x118] sm:$0xff]
  %v89 = vld [vmem:[%s1 + $0x120] sm:$0xff]
  %v90 = vld [vmem:[%s1 + $0x128] sm:$0xff]
  %v91 = vld [vmem:[%s1 + $0x130] sm:$0xff]
  %v92 = vld [vmem:[%s1 + $0x138] sm:$0xff]
  %v93 = vld [vmem:[%s1 + $0x140] sm:$0xff]
  %v94 = vld [vmem:[%s1 + $0x148] sm:$0xff]
  %v95 = vld [vmem:[%s1 + $0x150] sm:$0xff]
  %v96 = vld [vmem:[%s1 + $0x158] sm:$0xff]
  %v97 = vld [vmem:[%s1 + $0x160] sm:$0xff]
  %v98 = vld [vmem:[%s1 + $0x168] sm:$0xff]
  %v99 = vld [vmem:[%s1 + $0x170] sm:$0xff]
  %v100 = vld [vmem:[%s1 + $0x178] sm:$0xff]
  %v101 = vld [vmem:[%s1 + $0x180] sm:$0xff]
  %v102 = vld [vmem:[%s1 + $0x188] sm:$0xff]
  %v103 = vld [vmem:[%s1 + $0x190] sm:$0xff]
  %v104 = vld [vmem:[%s1 + $0x198] sm:$0xff]
  %v105 = vld [vmem:[%s1 + $0x1a0] sm:$0xff]
  %v106 = vld [vmem:[%s1 + $0x1a8] sm:$0xff]
  %v107 = vld [vmem:[%s1 + $0x1b0] sm:$0xff]
  %v108 = vld [vmem:[%s1 + $0x1b8] sm:$0xff]
  %v109 = vld [vmem:[%s1 + $0x1c0] sm:$0xff]
  %v110 = vld [vmem:[%s1 + $0x1c8] sm:$0xff]
  %v111 = vld [vmem:[%s1 + $0x1d0] sm:$0xff]
  %v112 = vld [vmem:[%s1 + $0x1d8] sm:$0xff]
  %v113 = vld [vmem:[%s1 + $0x1e0] sm:$0xff]
  %v114 = vld [vmem:[%s1 + $0x1e8] sm:$0xff]
  %v115 = vld [vmem:[%s1 + $0x1f0] sm:$0xff]
  %v116 = vld [vmem:[%s1 + $0x1f8] sm:$0xff]
  %v117 = vld [vmem:[%s1 + $0x200] sm:$0xff]
  %v118 = vld [vmem:[%s1 + $0x208] sm:$0xff]
  %v119 = vld [vmem:[%s1 + $0x210] sm:$0xff]
  %v120 = vld [vmem:[%s1 + $0x218] sm:$0xff]
  %v121 = vld [vmem:[%s1 + $0x220] sm:$0xff]
  %v122 = vld [vmem:[%s1 + $0x228] sm:$0xff]
  %v123 = vld [vmem:[%s1 + $0x230] sm:$0xff]
  %v124 = vld [vmem:[%s1 + $0x238] sm:$0xff]
  %v125 = vld [vmem:[%s1 + $0x240] sm:$0xff]
  %v126 = vld [vmem:[%s1 + $0x248] sm:$0xff]
  %v127 = vld [vmem:[%s1 + $0x250] sm:$0xff]
  %v128 = vld [vmem:[%s5] sm:$0x1]
  %v129 = vlaneseq
  %v130 = vshrl.u32 %v129, 7
  %v131 = vsub.s32 0, %v130
  %v132 = vrot.slane %v128, %v131
  %vm133 = vcmask 719872
  %v135 = vsel %vm133, %v27, 0
  %v138 = vsel %vm133, %v32, 0
  %v141 = vsel %vm133, %v37, 0
  %v144 = vsel %vm133, %v42, 0
  %v147 = vsel %vm133, %v47, 0
  %v150 = vsel %vm133, %v52, 0
  %152 = vmatprep.subr.mxu0 0.0
  %153 = vmatpush1.msra.mxu0 %v68
  %154 = vmatprep.subr.mxu0 0.0
  %155 = vmatpush1.msra.mxu0 %v67
  %156 = vmatprep.subr.mxu0 0.0
  %157 = vmatpush1.msra.mxu0 %v66
  %158 = vmatprep.subr.mxu0 0.0
  %159 = vmatpush1.msra.mxu0 %v65
  %160 = vmatprep.subr.mxu0 0.0
  %161 = vmatpush1.msra.mxu0 %v64
  %162 = vmatprep.subr.mxu0 0.0
  %163 = vmatpush1.msra.mxu0 %v63
  %164 = vmatprep.subr.mxu0 0.0
  %165 = vmatpush1.msra.mxu0 %v62
  %166 = vmatprep.subr.mxu0 0.0
  %167 = vmatpush1.msra.mxu0 %v61
  %168 = vmatprep.subr.mxu0 0.0
  %169 = vmatpush1.msra.mxu0 %v60
  %170 = vmatprep.subr.mxu0 0.0
  %171 = vmatpush1.msra.mxu0 %v59
  %172 = vmatprep.subr.mxu0 0.0
  %173 = vmatpush1.msra.mxu0 %v58
  %174 = vmatprep.subr.mxu0 0.0
  %175 = vmatpush1.msra.mxu0 %v57
  %176 = vmatprep.subr.mxu0 0.0
  %177 = vmatpush1.msra.mxu0 %v56
  %178 = vmatprep.subr.mxu0 0.0
  %179 = vmatpush1.msra.mxu0 %v55
  %180 = vmatprep.subr.mxu0 0.0
  %181 = vmatpush1.msra.mxu0 %v54
  %182 = vmatprep.subr.mxu0 0.0
  %183 = vmatpush1.msra.mxu0 %v53
  %184 = vmatprep.subr.mxu0 0.0
  %185 = vmatpush2.msra.mxu0 %v84
  %186 = vmatprep.subr.mxu0 0.0
  %187 = vmatpush2.msra.mxu0 %v83
  %188 = vmatprep.subr.mxu0 0.0
  %189 = vmatpush2.msra.mxu0 %v82
  %190 = vmatprep.subr.mxu0 0.0
  %191 = vmatpush2.msra.mxu0 %v81
  %192 = vmatprep.subr.mxu0 0.0
  %193 = vmatpush2.msra.mxu0 %v80
  %194 = vmatprep.subr.mxu0 0.0
  %195 = vmatpush2.msra.mxu0 %v79
  %196 = vmatprep.subr.mxu0 0.0
  %197 = vmatpush2.msra.mxu0 %v78
  %198 = vmatprep.subr.mxu0 0.0
  %199 = vmatpush2.msra.mxu0 %v77
  %200 = vmatprep.subr.mxu0 0.0
  %201 = vmatpush2.msra.mxu0 %v76
  %202 = vmatprep.subr.mxu0 0.0
  %203 = vmatpush2.msra.mxu0 %v75
  %204 = vmatprep.subr.mxu0 0.0
  %205 = vmatpush2.msra.mxu0 %v74
  %206 = vmatprep.subr.mxu0 0.0
  %207 = vmatpush2.msra.mxu0 %v73
  %208 = vmatprep.subr.mxu0 0.0
  %209 = vmatpush2.msra.mxu0 %v72
  %210 = vmatprep.subr.mxu0 0.0
  %211 = vmatpush2.msra.mxu0 %v71
  %212 = vmatprep.subr.mxu0 0.0
  %213 = vmatpush2.msra.mxu0 %v70
  %214 = vmatprep.subr.mxu0 0.0
  %215 = vmatpush2.msra.mxu0 %v69
  %216 = vmatprep.mubr.f32.mxu0 %v24
  %217 = vmatmul.mubr.f32.gmra.mxu0 %v23
  %v218 = vpop.f32.mrf.mxu0
  %v219 = vadd.f32 %v132, %v218
  %v220 = vpop.f32.mrf.mxu0
  %221 = vmatprep.mubr.f32.mxu0 %v29
  %222 = vmatmul.mubr.f32.gmra.mxu0 %v28
  %v223 = vpop.f32.mrf.mxu0
  %v224 = vadd.f32 %v132, %v223
  %v225 = vpop.f32.mrf.mxu0
  %226 = vmatprep.mubr.f32.mxu0 %v34
  %227 = vmatmul.mubr.f32.gmra.mxu0 %v33
  %v228 = vpop.f32.mrf.mxu0
  %v229 = vadd.f32 %v132, %v228
  %v230 = vpop.f32.mrf.mxu0
  %231 = vmatprep.mubr.f32.mxu0 %v39
  %232 = vmatmul.mubr.f32.gmra.mxu0 %v38
  %v233 = vpop.f32.mrf.mxu0
  %v234 = vadd.f32 %v132, %v233
  %v235 = vpop.f32.mrf.mxu0
  %236 = vmatprep.mubr.f32.mxu0 %v44
  %237 = vmatmul.mubr.f32.gmra.mxu0 %v43
  %v238 = vpop.f32.mrf.mxu0
  %v239 = vadd.f32 %v132, %v238
  %v240 = vpop.f32.mrf.mxu0
  %241 = vmatprep.mubr.f32.mxu0 %v49
  %242 = vmatmul.mubr.f32.gmra.mxu0 %v48
  %v243 = vpop.f32.mrf.mxu0
  %v244 = vadd.f32 %v132, %v243
  %v245 = vpop.f32.mrf.mxu0
  %246 = vdwg.mxu0
  %247 = vmatprep.subr.mxu0 0.0
  %248 = vmatpush1.msra.mxu0 %v100
  %249 = vmatprep.subr.mxu0 0.0
  %250 = vmatpush1.msra.mxu0 %v99
  %251 = vmatprep.subr.mxu0 0.0
  %252 = vmatpush1.msra.mxu0 %v98
  %253 = vmatprep.subr.mxu0 0.0
  %254 = vmatpush1.msra.mxu0 %v97
  %255 = vmatprep.subr.mxu0 0.0
  %256 = vmatpush1.msra.mxu0 %v96
  %257 = vmatprep.subr.mxu0 0.0
  %258 = vmatpush1.msra.mxu0 %v95
  %259 = vmatprep.subr.mxu0 0.0
  %260 = vmatpush1.msra.mxu0 %v94
  %261 = vmatprep.subr.mxu0 0.0
  %262 = vmatpush1.msra.mxu0 %v93
  %263 = vmatprep.subr.mxu0 0.0
  %264 = vmatpush1.msra.mxu0 %v92
  %265 = vmatprep.subr.mxu0 0.0
  %266 = vmatpush1.msra.mxu0 %v91
  %267 = vmatprep.subr.mxu0 0.0
  %268 = vmatpush1.msra.mxu0 %v90
  %269 = vmatprep.subr.mxu0 0.0
  %270 = vmatpush1.msra.mxu0 %v89
  %271 = vmatprep.subr.mxu0 0.0
  %272 = vmatpush1.msra.mxu0 %v88
  %273 = vmatprep.subr.mxu0 0.0
  %274 = vmatpush1.msra.mxu0 %v87
  %275 = vmatprep.subr.mxu0 0.0
  %276 = vmatpush1.msra.mxu0 %v86
  %277 = vmatprep.subr.mxu0 0.0
  %278 = vmatpush1.msra.mxu0 %v85
  %279 = vmatprep.subr.mxu0 0.0
  %280 = vmatpush2.msra.mxu0 %v116
  %281 = vmatprep.subr.mxu0 0.0
  %282 = vmatpush2.msra.mxu0 %v115
  %283 = vmatprep.subr.mxu0 0.0
  %284 = vmatpush2.msra.mxu0 %v114
  %285 = vmatprep.subr.mxu0 0.0
  %286 = vmatpush2.msra.mxu0 %v113
  %287 = vmatprep.subr.mxu0 0.0
  %288 = vmatpush2.msra.mxu0 %v112
  %289 = vmatprep.subr.mxu0 0.0
  %290 = vmatpush2.msra.mxu0 %v111
  %291 = vmatprep.subr.mxu0 0.0
  %292 = vmatpush2.msra.mxu0 %v110
  %293 = vmatprep.subr.mxu0 0.0
  %294 = vmatpush2.msra.mxu0 %v109
  %295 = vmatprep.subr.mxu0 0.0
  %296 = vmatpush2.msra.mxu0 %v108
  %297 = vmatprep.subr.mxu0 0.0
  %298 = vmatpush2.msra.mxu0 %v107
  %299 = vmatprep.subr.mxu0 0.0
  %300 = vmatpush2.msra.mxu0 %v106
  %301 = vmatprep.subr.mxu0 0.0
  %302 = vmatpush2.msra.mxu0 %v105
  %303 = vmatprep.subr.mxu0 0.0
  %304 = vmatpush2.msra.mxu0 %v104
  %305 = vmatprep.subr.mxu0 0.0
  %306 = vmatpush2.msra.mxu0 %v103
  %307 = vmatprep.subr.mxu0 0.0
  %308 = vmatpush2.msra.mxu0 %v102
  %309 = vmatprep.subr.mxu0 0.0
  %310 = vmatpush2.msra.mxu0 %v101
  %311 = vmatprep.mubr.f32.mxu0 %v26
  %312 = vmatmul.mubr.f32.gmra.mxu0 %v25
  %v313 = vpop.f32.mrf.mxu0
  %v314 = vadd.f32 %v219, %v313
  %v315 = vpop.f32.mrf.mxu0
  %316 = vmatprep.mubr.f32.mxu0 %v31
  %317 = vmatmul.mubr.f32.gmra.mxu0 %v30
  %v318 = vpop.f32.mrf.mxu0
  %v319 = vadd.f32 %v224, %v318
  %v320 = vpop.f32.mrf.mxu0
  %321 = vmatprep.mubr.f32.mxu0 %v36
  %322 = vmatmul.mubr.f32.gmra.mxu0 %v35
  %v323 = vpop.f32.mrf.mxu0
  %v324 = vadd.f32 %v229, %v323
  %v325 = vpop.f32.mrf.mxu0
  %326 = vmatprep.mubr.f32.mxu0 %v41
  %327 = vmatmul.mubr.f32.gmra.mxu0 %v40
  %v328 = vpop.f32.mrf.mxu0
  %v329 = vadd.f32 %v234, %v328
  %v330 = vpop.f32.mrf.mxu0
  %331 = vmatprep.mubr.f32.mxu0 %v46
  %332 = vmatmul.mubr.f32.gmra.mxu0 %v45
  %v333 = vpop.f32.mrf.mxu0
  %v334 = vadd.f32 %v239, %v333
  %v335 = vpop.f32.mrf.mxu0
  %336 = vmatprep.mubr.f32.mxu0 %v51
  %337 = vmatmul.mubr.f32.gmra.mxu0 %v50
  %v338 = vpop.f32.mrf.mxu0
  %v339 = vadd.f32 %v244, %v338
  %v340 = vpop.f32.mrf.mxu0
  %341 = vdwg.mxu0
  %342 = vmatprep.subr.mxu0 0.0
  %343 = vmatpush1.msra.mxu0 0.0
  %344 = vmatprep.subr.mxu0 0.0
  %345 = vmatpush1.msra.mxu0 0.0
  %346 = vmatprep.subr.mxu0 0.0
  %347 = vmatpush1.msra.mxu0 0.0
  %348 = vmatprep.subr.mxu0 0.0
  %349 = vmatpush1.msra.mxu0 0.0
  %350 = vmatprep.subr.mxu0 0.0
  %351 = vmatpush1.msra.mxu0 0.0
  %352 = vmatprep.subr.mxu0 0.0
  %353 = vmatpush1.msra.mxu0 %v127
  %354 = vmatprep.subr.mxu0 0.0
  %355 = vmatpush1.msra.mxu0 %v126
  %356 = vmatprep.subr.mxu0 0.0
  %357 = vmatpush1.msra.mxu0 %v125
  %358 = vmatprep.subr.mxu0 0.0
  %359 = vmatpush1.msra.mxu0 %v124
  %360 = vmatprep.subr.mxu0 0.0
  %361 = vmatpush1.msra.mxu0 %v123
  %362 = vmatprep.subr.mxu0 0.0
  %363 = vmatpush1.msra.mxu0 %v122
  %364 = vmatprep.subr.mxu0 0.0
  %365 = vmatpush1.msra.mxu0 %v121
  %366 = vmatprep.subr.mxu0 0.0
  %367 = vmatpush1.msra.mxu0 %v120
  %368 = vmatprep.subr.mxu0 0.0
  %369 = vmatpush1.msra.mxu0 %v119
  %370 = vmatprep.subr.mxu0 0.0
  %371 = vmatpush1.msra.mxu0 %v118
  %372 = vmatprep.subr.mxu0 0.0
  %373 = vmatpush1.msra.mxu0 %v117
  %374 = vmatprep.subr.mxu0 0.0
  %375 = vmatpush2.msra.mxu0 0.0
  %376 = vmatprep.subr.mxu0 0.0
  %377 = vmatpush2.msra.mxu0 0.0
  %378 = vmatprep.subr.mxu0 0.0
  %379 = vmatpush2.msra.mxu0 0.0
  %380 = vmatprep.subr.mxu0 0.0
  %381 = vmatpush2.msra.mxu0 0.0
  %382 = vmatprep.subr.mxu0 0.0
  %383 = vmatpush2.msra.mxu0 0.0
  %384 = vmatprep.subr.mxu0 0.0
  %385 = vmatpush2.msra.mxu0 0.0
  %386 = vmatprep.subr.mxu0 0.0
  %387 = vmatpush2.msra.mxu0 0.0
  %388 = vmatprep.subr.mxu0 0.0
  %389 = vmatpush2.msra.mxu0 0.0
  %390 = vmatprep.subr.mxu0 0.0
  %391 = vmatpush2.msra.mxu0 0.0
  %392 = vmatprep.subr.mxu0 0.0
  %393 = vmatpush2.msra.mxu0 0.0
  %394 = vmatprep.subr.mxu0 0.0
  %395 = vmatpush2.msra.mxu0 0.0
  %396 = vmatprep.subr.mxu0 0.0
  %397 = vmatpush2.msra.mxu0 0.0
  %398 = vmatprep.subr.mxu0 0.0
  %399 = vmatpush2.msra.mxu0 0.0
  %400 = vmatprep.subr.mxu0 0.0
  %401 = vmatpush2.msra.mxu0 0.0
  %402 = vmatprep.subr.mxu0 0.0
  %403 = vmatpush2.msra.mxu0 0.0
  %404 = vmatprep.subr.mxu0 0.0
  %405 = vmatpush2.msra.mxu0 0.0
  %406 = vmatprep.mubr.f32.mxu0 0.0
  %407 = vmatmul.mubr.f32.gmra.mxu0 %v135
  %v408 = vpop.f32.mrf.mxu0
  %v409 = vadd.f32 %v314, %v408
  %v410 = vpop.f32.mrf.mxu0
  %411 = vmatprep.mubr.f32.mxu0 0.0
  %412 = vmatmul.mubr.f32.gmra.mxu0 %v138
  %v413 = vpop.f32.mrf.mxu0
  %v414 = vadd.f32 %v319, %v413
  %v415 = vpop.f32.mrf.mxu0
  %416 = vmatprep.mubr.f32.mxu0 0.0
  %417 = vmatmul.mubr.f32.gmra.mxu0 %v141
  %v418 = vpop.f32.mrf.mxu0
  %v419 = vadd.f32 %v324, %v418
  %v420 = vpop.f32.mrf.mxu0
  %421 = vmatprep.mubr.f32.mxu0 0.0
  %422 = vmatmul.mubr.f32.gmra.mxu0 %v144
  %v423 = vpop.f32.mrf.mxu0
  %v424 = vadd.f32 %v329, %v423
  %v425 = vpop.f32.mrf.mxu0
  %426 = vmatprep.mubr.f32.mxu0 0.0
  %427 = vmatmul.mubr.f32.gmra.mxu0 %v147
  %v428 = vpop.f32.mrf.mxu0
  %v429 = vadd.f32 %v334, %v428
  %v430 = vpop.f32.mrf.mxu0
  %431 = vmatprep.mubr.f32.mxu0 0.0
  %432 = vmatmul.mubr.f32.gmra.mxu0 %v150
  %v433 = vpop.f32.mrf.mxu0
  %v434 = vadd.f32 %v339, %v433
  %v435 = vpop.f32.mrf.mxu0
  %436 = vdwg.mxu0
  %v437 = vmax.f32 %v409, 0.0
  %v438 = vmax.f32 %v414, 0.0
  %v439 = vmax.f32 %v419, 0.0
  %v440 = vmax.f32 %v424, 0.0
  %v441 = vmax.f32 %v429, 0.0
  %v442 = vmax.f32 %v434, 0.0
  %v443 = vld [vmem:[%s2] sm:$0xff]
  %v444 = vld [vmem:[%s2 + $0x8] sm:$0xff]
  %v445 = vld [vmem:[%s2 + $0x10] sm:$0xff]
  %v446 = vld [vmem:[%s2 + $0x18] sm:$0xff]
  %v447 = vld [vmem:[%s5 + $0x1] sm:$0x1]
  %v448 = vlaneseq
  %v449 = vshrl.u32 %v448, 7
  %v450 = vsub.s32 0, %v449
  %v451 = vrot.slane %v447, %v450
  %vm452 = vcmask 261120
  %v454 = vsel %vm452, %v437, 0
  %v457 = vsel %vm452, %v438, 0
  %v460 = vsel %vm452, %v439, 0
  %v463 = vsel %vm452, %v440, 0
  %v466 = vsel %vm452, %v441, 0
  %v469 = vsel %vm452, %v442, 0
  %471 = vmatprep.subr.mxu0 0.0
  %472 = vmatpush1.msra.mxu0 0.0
  %473 = vmatprep.subr.mxu0 0.0
  %474 = vmatpush1.msra.mxu0 0.0
  %475 = vmatprep.subr.mxu0 0.0
  %476 = vmatpush1.msra.mxu0 0.0
  %477 = vmatprep.subr.mxu0 0.0
  %478 = vmatpush1.msra.mxu0 0.0
  %479 = vmatprep.subr.mxu0 0.0
  %480 = vmatpush1.msra.mxu0 0.0
  %481 = vmatprep.subr.mxu0 0.0
  %482 = vmatpush1.msra.mxu0 0.0
  %483 = vmatprep.subr.mxu0 0.0
  %484 = vmatpush1.msra.mxu0 0.0
  %485 = vmatprep.subr.mxu0 0.0
  %486 = vmatpush1.msra.mxu0 0.0
  %487 = vmatprep.subr.mxu0 0.0
  %488 = vmatpush1.msra.mxu0 0.0
  %489 = vmatprep.subr.mxu0 0.0
  %490 = vmatpush1.msra.mxu0 0.0
  %491 = vmatprep.subr.mxu0 0.0
  %492 = vmatpush1.msra.mxu0 0.0
  %493 = vmatprep.subr.mxu0 0.0
  %494 = vmatpush1.msra.mxu0 0.0
  %495 = vmatprep.subr.mxu0 0.0
  %496 = vmatpush1.msra.mxu0 %v446
  %497 = vmatprep.subr.mxu0 0.0
  %498 = vmatpush1.msra.mxu0 %v445
  %499 = vmatprep.subr.mxu0 0.0
  %500 = vmatpush1.msra.mxu0 %v444
  %501 = vmatprep.subr.mxu0 0.0
  %502 = vmatpush1.msra.mxu0 %v443
  %503 = vmatprep.subr.mxu0 0.0
  %504 = vmatpush2.msra.mxu0 0.0
  %505 = vmatprep.subr.mxu0 0.0
  %506 = vmatpush2.msra.mxu0 0.0
  %507 = vmatprep.subr.mxu0 0.0
  %508 = vmatpush2.msra.mxu0 0.0
  %509 = vmatprep.subr.mxu0 0.0
  %510 = vmatpush2.msra.mxu0 0.0
  %511 = vmatprep.subr.mxu0 0.0
  %512 = vmatpush2.msra.mxu0 0.0
  %513 = vmatprep.subr.mxu0 0.0
  %514 = vmatpush2.msra.mxu0 0.0
  %515 = vmatprep.subr.mxu0 0.0
  %516 = vmatpush2.msra.mxu0 0.0
  %517 = vmatprep.subr.mxu0 0.0
  %518 = vmatpush2.msra.mxu0 0.0
  %519 = vmatprep.subr.mxu0 0.0
  %520 = vmatpush2.msra.mxu0 0.0
  %521 = vmatprep.subr.mxu0 0.0
  %522 = vmatpush2.msra.mxu0 0.0
  %523 = vmatprep.subr.mxu0 0.0
  %524 = vmatpush2.msra.mxu0 0.0
  %525 = vmatprep.subr.mxu0 0.0
  %526 = vmatpush2.msra.mxu0 0.0
  %527 = vmatprep.subr.mxu0 0.0
  %528 = vmatpush2.msra.mxu0 0.0
  %529 = vmatprep.subr.mxu0 0.0
  %530 = vmatpush2.msra.mxu0 0.0
  %531 = vmatprep.subr.mxu0 0.0
  %532 = vmatpush2.msra.mxu0 0.0
  %533 = vmatprep.subr.mxu0 0.0
  %534 = vmatpush2.msra.mxu0 0.0
  %535 = vmatprep.mubr.f32.mxu0 0.0
  %536 = vmatmul.mubr.f32.gmra.mxu0 %v454
  %v537 = vpop.f32.mrf.mxu0
  %v538 = vadd.f32 %v451, %v537
  %v539 = vpop.f32.mrf.mxu0
  %540 = vmatprep.mubr.f32.mxu0 0.0
  %541 = vmatmul.mubr.f32.gmra.mxu0 %v457
  %v542 = vpop.f32.mrf.mxu0
  %v543 = vadd.f32 %v451, %v542
  %v544 = vpop.f32.mrf.mxu0
  %545 = vmatprep.mubr.f32.mxu0 0.0
  %546 = vmatmul.mubr.f32.gmra.mxu0 %v460
  %v547 = vpop.f32.mrf.mxu0
  %v548 = vadd.f32 %v451, %v547
  %v549 = vpop.f32.mrf.mxu0
  %550 = vmatprep.mubr.f32.mxu0 0.0
  %551 = vmatmul.mubr.f32.gmra.mxu0 %v463
  %v552 = vpop.f32.mrf.mxu0
  %v553 = vadd.f32 %v451, %v552
  %v554 = vpop.f32.mrf.mxu0
  %555 = vmatprep.mubr.f32.mxu0 0.0
  %556 = vmatmul.mubr.f32.gmra.mxu0 %v466
  %v557 = vpop.f32.mrf.mxu0
  %v558 = vadd.f32 %v451, %v557
  %v559 = vpop.f32.mrf.mxu0
  %560 = vmatprep.mubr.f32.mxu0 0.0
  %561 = vmatmul.mubr.f32.gmra.mxu0 %v469
  %v562 = vpop.f32.mrf.mxu0
  %v563 = vadd.f32 %v451, %v562
  %v564 = vpop.f32.mrf.mxu0
  %565 = vdwg.mxu0
  %v566 = vsel %vm452, %v538, -inf
  %v567 = vrot.slane %v566, 4
  %v568 = vmax.f32 %v566, %v567
  %v569 = vrot.slane %v568, 2
  %v570 = vmax.f32 %v568, %v569
  %v571 = vrot.slane %v570, 1
  %v572 = vmax.f32 %v570, %v571
  %v573 = vsel %vm452, %v543, -inf
  %v574 = vrot.slane %v573, 4
  %v575 = vmax.f32 %v573, %v574
  %v576 = vrot.slane %v575, 2
  %v577 = vmax.f32 %v575, %v576
  %v578 = vrot.slane %v577, 1
  %v579 = vmax.f32 %v577, %v578
  %v580 = vsel %vm452, %v548, -inf
  %v581 = vrot.slane %v580, 4
  %v582 = vmax.f32 %v580, %v581
  %v583 = vrot.slane %v582, 2
  %v584 = vmax.f32 %v582, %v583
  %v585 = vrot.slane %v584, 1
  %v586 = vmax.f32 %v584, %v585
  %v587 = vsel %vm452, %v553, -inf
  %v588 = vrot.slane %v587, 4
  %v589 = vmax.f32 %v587, %v588
  %v590 = vrot.slane %v589, 2
  %v591 = vmax.f32 %v589, %v590
  %v592 = vrot.slane %v591, 1
  %v593 = vmax.f32 %v591, %v592
  %v594 = vsel %vm452, %v558, -inf
  %v595 = vrot.slane %v594, 4
  %v596 = vmax.f32 %v594, %v595
  %v597 = vrot.slane %v596, 2
  %v598 = vmax.f32 %v596, %v597
  %v599 = vrot.slane %v598, 1
  %v600 = vmax.f32 %v598, %v599
  %v601 = vsel %vm452, %v563, -inf
  %v602 = vrot.slane %v601, 4
  %v603 = vmax.f32 %v601, %v602
  %v604 = vrot.slane %v603, 2
  %v605 = vmax.f32 %v603, %v604
  %v606 = vrot.slane %v605, 1
  %v607 = vmax.f32 %v605, %v606
  %v608 = vsel %vm452, %v538, inf
  %v609 = vrot.slane %v608, 4
  %v610 = vmin.f32 %v608, %v609
  %v611 = vrot.slane %v610, 2
  %v612 = vmin.f32 %v610, %v611
  %v613 = vrot.slane %v612, 1
  %v614 = vmin.f32 %v612, %v613
  %v615 = vsel %vm452, %v543, inf
  %v616 = vrot.slane %v615, 4
  %v617 = vmin.f32 %v615, %v616
  %v618 = vrot.slane %v617, 2
  %v619 = vmin.f32 %v617, %v618
  %v620 = vrot.slane %v619, 1
  %v621 = vmin.f32 %v619, %v620
  %v622 = vsel %vm452, %v548, inf
  %v623 = vrot.slane %v622, 4
  %v624 = vmin.f32 %v622, %v623
  %v625 = vrot.slane %v624, 2
  %v626 = vmin.f32 %v624, %v625
  %v627 = vrot.slane %v626, 1
  %v628 = vmin.f32 %v626, %v627
  %v629 = vsel %vm452, %v553, inf
  %v630 = vrot.slane %v629, 4
  %v631 = vmin.f32 %v629, %v630
  %v632 = vrot.slane %v631, 2
  %v633 = vmin.f32 %v631, %v632
  %v634 = vrot.slane %v633, 1
  %v635 = vmin.f32 %v633, %v634
  %v636 = vsel %vm452, %v558, inf
  %v637 = vrot.slane %v636, 4
  %v638 = vmin.f32 %v636, %v637
  %v639 = vrot.slane %v638, 2
  %v640 = vmin.f32 %v638, %v639
  %v641 = vrot.slane %v640, 1
  %v642 = vmin.f32 %v640, %v641
  %v643 = vsel %vm452, %v563, inf
  %v644 = vrot.slane %v643, 4
  %v645 = vmin.f32 %v643, %v644
  %v646 = vrot.slane %v645, 2
  %v647 = vmin.f32 %v645, %v646
  %v648 = vrot.slane %v647, 1
  %v649 = vmin.f32 %v647, %v648
  %vm656 = vcmask 1041409
  %v657 = vsel %vm656, %v579, %v572
  %vm658 = vcmask 1042434
  %v659 = vsel %vm658, %v586, %v657
  %vm660 = vcmask 1043459
  %v661 = vsel %vm660, %v593, %v659
  %vm662 = vcmask 1044484
  %v663 = vsel %vm662, %v600, %v661
  %vm664 = vcmask 1045509
  %v665 = vsel %vm664, %v607, %v663
  %v673 = vsel %vm656, %v621, %v614
  %v674 = vsel %vm658, %v628, %v673
  %v675 = vsel %vm660, %v635, %v674
  %v676 = vsel %vm662, %v642, %v675
  %v677 = vsel %vm664, %v649, %v676
  %678 = vrot.lane.b32.xlu0 %v677, 32
  %v679 = vpop.permute.xlu0 %678
  %v681 = vsel %vm452, %v665, %v679
  %v682 = vld [vmem:[%s3] sm:$0xff]
  %v683 = vld [vmem:[%s3 + $0x8] sm:$0xff]
  %v684 = vld [vmem:[%s3 + $0x10] sm:$0xff]
  %v685 = vld [vmem:[%s3 + $0x18] sm:$0xff]
  %v686 = vld [vmem:[%s3 + $0x20] sm:$0xff]
  %v687 = vld [vmem:[%s3 + $0x28] sm:$0xff]
  %v688 = vld [vmem:[%s3 + $0x30] sm:$0xff]
  %v689 = vld [vmem:[%s3 + $0x38] sm:$0xff]
  %v690 = vld [vmem:[%s5 + $0x2] sm:$0x1]
  %v691 = vlaneseq
  %v692 = vshrl.u32 %v691, 7
  %v693 = vsub.s32 0, %v692
  %v694 = vrot.slane %v690, %v693
  %vm695 = vcmask 523264
  %v697 = vsel %vm695, %v681, 0
  %699 = vmatprep.subr.mxu0 0.0
  %700 = vmatpush1.msra.mxu0 0.0
  %701 = vmatprep.subr.mxu0 0.0
  %702 = vmatpush1.msra.mxu0 0.0
  %703 = vmatprep.subr.mxu0 0.0
  %704 = vmatpush1.msra.mxu0 0.0
  %705 = vmatprep.subr.mxu0 0.0
  %706 = vmatpush1.msra.mxu0 0.0
  %707 = vmatprep.subr.mxu0 0.0
  %708 = vmatpush1.msra.mxu0 0.0
  %709 = vmatprep.subr.mxu0 0.0
  %710 = vmatpush1.msra.mxu0 0.0
  %711 = vmatprep.subr.mxu0 0.0
  %712 = vmatpush1.msra.mxu0 0.0
  %713 = vmatprep.subr.mxu0 0.0
  %714 = vmatpush1.msra.mxu0 0.0
  %715 = vmatprep.subr.mxu0 0.0
  %716 = vmatpush1.msra.mxu0 %v689
  %717 = vmatprep.subr.mxu0 0.0
  %718 = vmatpush1.msra.mxu0 %v688
  %719 = vmatprep.subr.mxu0 0.0
  %720 = vmatpush1.msra.mxu0 %v687
  %721 = vmatprep.subr.mxu0 0.0
  %722 = vmatpush1.msra.mxu0 %v686
  %723 = vmatprep.subr.mxu0 0.0
  %724 = vmatpush1.msra.mxu0 %v685
  %725 = vmatprep.subr.mxu0 0.0
  %726 = vmatpush1.msra.mxu0 %v684
  %727 = vmatprep.subr.mxu0 0.0
  %728 = vmatpush1.msra.mxu0 %v683
  %729 = vmatprep.subr.mxu0 0.0
  %730 = vmatpush1.msra.mxu0 %v682
  %731 = vmatprep.subr.mxu0 0.0
  %732 = vmatpush2.msra.mxu0 0.0
  %733 = vmatprep.subr.mxu0 0.0
  %734 = vmatpush2.msra.mxu0 0.0
  %735 = vmatprep.subr.mxu0 0.0
  %736 = vmatpush2.msra.mxu0 0.0
  %737 = vmatprep.subr.mxu0 0.0
  %738 = vmatpush2.msra.mxu0 0.0
  %739 = vmatprep.subr.mxu0 0.0
  %740 = vmatpush2.msra.mxu0 0.0
  %741 = vmatprep.subr.mxu0 0.0
  %742 = vmatpush2.msra.mxu0 0.0
  %743 = vmatprep.subr.mxu0 0.0
  %744 = vmatpush2.msra.mxu0 0.0
  %745 = vmatprep.subr.mxu0 0.0
  %746 = vmatpush2.msra.mxu0 0.0
  %747 = vmatprep.subr.mxu0 0.0
  %748 = vmatpush2.msra.mxu0 0.0
  %749 = vmatprep.subr.mxu0 0.0
  %750 = vmatpush2.msra.mxu0 0.0
  %751 = vmatprep.subr.mxu0 0.0
  %752 = vmatpush2.msra.mxu0 0.0
  %753 = vmatprep.subr.mxu0 0.0
  %754 = vmatpush2.msra.mxu0 0.0
  %755 = vmatprep.subr.mxu0 0.0
  %756 = vmatpush2.msra.mxu0 0.0
  %757 = vmatprep.subr.mxu0 0.0
  %758 = vmatpush2.msra.mxu0 0.0
  %759 = vmatprep.subr.mxu0 0.0
  %760 = vmatpush2.msra.mxu0 0.0
  %761 = vmatprep.subr.mxu0 0.0
  %762 = vmatpush2.msra.mxu0 0.0
  %763 = vmatprep.mubr.f32.mxu0 0.0
  %764 = vmatmul.mubr.f32.gmra.mxu0 %v697
  %v765 = vpop.f32.mrf.mxu0
  %v766 = vadd.f32 %v694, %v765
  %v767 = vpop.f32.mrf.mxu0
  %768 = vdwg.mxu0
  %v769 = vmax.f32 %v766, 0.0
  %v770 = vld [vmem:[%s4] sm:$0xff]
  %v771 = vld [vmem:[%s4 + $0x8] sm:$0xff]
  %v772 = vld [vmem:[%s4 + $0x10] sm:$0xff]
  %v773 = vld [vmem:[%s4 + $0x18] sm:$0xff]
  %v774 = vld [vmem:[%s5 + $0x3] sm:$0x1]
  %v775 = vlaneseq
  %v776 = vshrl.u32 %v775, 7
  %v777 = vsub.s32 0, %v776
  %v778 = vrot.slane %v774, %v777
  %v780 = vsel %vm452, %v769, 0
  %782 = vmatprep.subr.mxu0 0.0
  %783 = vmatpush1.msra.mxu0 0.0
  %784 = vmatprep.subr.mxu0 0.0
  %785 = vmatpush1.msra.mxu0 0.0
  %786 = vmatprep.subr.mxu0 0.0
  %787 = vmatpush1.msra.mxu0 0.0
  %788 = vmatprep.subr.mxu0 0.0
  %789 = vmatpush1.msra.mxu0 0.0
  %790 = vmatprep.subr.mxu0 0.0
  %791 = vmatpush1.msra.mxu0 0.0
  %792 = vmatprep.subr.mxu0 0.0
  %793 = vmatpush1.msra.mxu0 0.0
  %794 = vmatprep.subr.mxu0 0.0
  %795 = vmatpush1.msra.mxu0 0.0
  %796 = vmatprep.subr.mxu0 0.0
  %797 = vmatpush1.msra.mxu0 0.0
  %798 = vmatprep.subr.mxu0 0.0
  %799 = vmatpush1.msra.mxu0 0.0
  %800 = vmatprep.subr.mxu0 0.0
  %801 = vmatpush1.msra.mxu0 0.0
  %802 = vmatprep.subr.mxu0 0.0
  %803 = vmatpush1.msra.mxu0 0.0
  %804 = vmatprep.subr.mxu0 0.0
  %805 = vmatpush1.msra.mxu0 0.0
  %806 = vmatprep.subr.mxu0 0.0
  %807 = vmatpush1.msra.mxu0 %v773
  %808 = vmatprep.subr.mxu0 0.0
  %809 = vmatpush1.msra.mxu0 %v772
  %810 = vmatprep.subr.mxu0 0.0
  %811 = vmatpush1.msra.mxu0 %v771
  %812 = vmatprep.subr.mxu0 0.0
  %813 = vmatpush1.msra.mxu0 %v770
  %814 = vmatprep.subr.mxu0 0.0
  %815 = vmatpush2.msra.mxu0 0.0
  %816 = vmatprep.subr.mxu0 0.0
  %817 = vmatpush2.msra.mxu0 0.0
  %818 = vmatprep.subr.mxu0 0.0
  %819 = vmatpush2.msra.mxu0 0.0
  %820 = vmatprep.subr.mxu0 0.0
  %821 = vmatpush2.msra.mxu0 0.0
  %822 = vmatprep.subr.mxu0 0.0
  %823 = vmatpush2.msra.mxu0 0.0
  %824 = vmatprep.subr.mxu0 0.0
  %825 = vmatpush2.msra.mxu0 0.0
  %826 = vmatprep.subr.mxu0 0.0
  %827 = vmatpush2.msra.mxu0 0.0
  %828 = vmatprep.subr.mxu0 0.0
  %829 = vmatpush2.msra.mxu0 0.0
  %830 = vmatprep.subr.mxu0 0.0
  %831 = vmatpush2.msra.mxu0 0.0
  %832 = vmatprep.subr.mxu0 0.0
  %833 = vmatpush2.msra.mxu0 0.0
  %834 = vmatprep.subr.mxu0 0.0
  %835 = vmatpush2.msra.mxu0 0.0
  %836 = vmatprep.subr.mxu0 0.0
  %837 = vmatpush2.msra.mxu0 0.0
  %838 = vmatprep.subr.mxu0 0.0
  %839 = vmatpush2.msra.mxu0 0.0
  %840 = vmatprep.subr.mxu0 0.0
  %841 = vmatpush2.msra.mxu0 0.0
  %842 = vmatprep.subr.mxu0 0.0
  %843 = vmatpush2.msra.mxu0 0.0
  %844 = vmatprep.subr.mxu0 0.0
  %845 = vmatpush2.msra.mxu0 0.0
  %846 = vmatprep.mubr.f32.mxu0 0.0
  %847 = vmatmul.mubr.f32.gmra.mxu0 %v780
  %v848 = vpop.f32.mrf.mxu0
  %v849 = vadd.f32 %v778, %v848
  %v850 = vpop.f32.mrf.mxu0
  %851 = vdwg.mxu0
  %v852 = vtanh.pop %v849
  %v853 = vmul.f32 %v852, 8.0
  %vm854 = vcmask 13312
  %855 = vst.msk [vmem:[%s6] sm:$0x3f] %vm854, %v853
  // Predicated region
  $region26: #{tpu_custom_call.1} parent=0 // pred_check
    _
  $region27: #{tpu_custom_call.1} parent=0 // pred_check_branch
    %857 = sbr.rel (0) target = $region29
  $region28: #{tpu_custom_call.1} parent=0 // pred_region
    _
  $region29: #{tpu_custom_call.1} parent=0 // pred_fallthru
    _
  // Predicated region
  $region30: #{tpu_custom_call.1} parent=0 // pred_check
    _
  $region31: #{tpu_custom_call.1} parent=0 // pred_check_branch
    %859 = sbr.rel (0) target = $region33
  $region32: #{tpu_custom_call.1} parent=0 // pred_region
    _
  $region33: #{tpu_custom_call.1} parent=0 // pred_fallthru
    _

</llo_original>
